<compile_context>
chip_gen: v5e
topology: v5e:2x2
jax: 0.10.0
libtpu: 0.0.40
codegen_flags: <defaults>
</compile_context>

<pallas_src>
import functools

import jax
import jax.numpy as jnp
from jax.experimental import pallas as pl
from jax.experimental.pallas import tpu as pltpu


# Logical and lane-padded dims.
_D_IN = 256
_H = 300
_H_PAD = 384       # 300 -> 3 * 128
_D_OUT = 10
_D_OUT_PAD = 128   # 10  -> 128


def _relu_in_bf16() -> bool:
    """True on chips with a bf16 VALU (v6e / v7x); False on v5e and older."""
    try:
        kind = jax.devices()[0].device_kind.lower()
    except Exception:
        return False
    return not any(tag in kind for tag in ("v2", "v3", "v4", "v5"))


_RELU_IN_BF16 = _relu_in_bf16()


def _mlp_kernel(x_ref, w1_ref, w2_ref, w3_ref, o_ref, *, relu_bf16):
    # x: (TB, 256) f32; w1: (256, 384) bf16; w2: (384, 384) bf16;
    # w3: (384, 128) bf16; o: (TB, 128) f32.
    x = x_ref[...].astype(jnp.bfloat16)          # cast on the VPU, not in XLA
    h1 = jnp.dot(x, w1_ref[...], preferred_element_type=jnp.float32)
    if relu_bf16:
        a1 = jnp.maximum(h1.astype(jnp.bfloat16), 0)        # bf16 VALU (v6e/v7x)
    else:
        a1 = jnp.maximum(h1, 0.0).astype(jnp.bfloat16)       # f32 VALU (v5e)
    h2 = jnp.dot(a1, w2_ref[...], preferred_element_type=jnp.float32)
    if relu_bf16:
        a2 = jnp.maximum(h2.astype(jnp.bfloat16), 0)
    else:
        a2 = jnp.maximum(h2, 0.0).astype(jnp.bfloat16)
    out = jnp.dot(a2, w3_ref[...], preferred_element_type=jnp.float32)
    o_ref[...] = out.astype(o_ref.dtype)


def _pad_to(a, shape):
    pads = [(0, t - s) for s, t in zip(a.shape, shape)]
    return jnp.pad(a, pads)


@functools.partial(jax.jit, static_argnames=("block_b",))
def class_relu_forward(x, w1, w2, w3, *, block_b=1024):
    """x: (B, 256) f32. Weights are stored pre-transposed (in, out): y = x @ W."""
    B = x.shape[0]

    # Batch tile: as big as block_b allows (amortize per-step overhead),
    # multiple of 16 (bf16 sublane packing), and >= 2 grid steps when the
    # batch is big enough so both v7x TensorCores get work.
    if B <= 16:
        tb = B                                   # full-dim block (always legal)
    else:
        tb = min(block_b, 16 * pl.cdiv(pl.cdiv(B, 2), 16))
        tb = min(tb, B)
    steps = pl.cdiv(B, tb)

    # Small, one-time weight prep: bf16 + zero-pad feature dims to lane
    # multiples of 128 (zero rows/cols are inert through matmul + ReLU).
    w1_p = _pad_to(w1.astype(jnp.bfloat16), (_D_IN, _H_PAD))
    w2_p = _pad_to(w2.astype(jnp.bfloat16), (_H_PAD, _H_PAD))
    w3_p = _pad_to(w3.astype(jnp.bfloat16), (_H_PAD, _D_OUT_PAD))

    b_cov = tb * steps   # rows actually executed (last block may be partial)
    flops = 2 * b_cov * (_D_IN * _H_PAD + _H_PAD * _H_PAD + _H_PAD * _D_OUT_PAD)
    bytes_accessed = (
        x.size * x.dtype.itemsize                       # f32 x read by kernel
        + (w1_p.size + w2_p.size + w3_p.size) * 2       # bf16 weights
        + b_cov * _D_OUT_PAD * 4                        # f32 output
    )

    kernel = functools.partial(_mlp_kernel, relu_bf16=_RELU_IN_BF16)

    out_padded = pl.pallas_call(
        kernel,
        out_shape=jax.ShapeDtypeStruct((B, _D_OUT_PAD), jnp.float32),
        grid=(steps,),
        in_specs=[
            pl.BlockSpec((tb, _D_IN), lambda i: (i, 0)),
            pl.BlockSpec((_D_IN, _H_PAD), lambda i: (0, 0)),
            pl.BlockSpec((_H_PAD, _H_PAD), lambda i: (0, 0)),
            pl.BlockSpec((_H_PAD, _D_OUT_PAD), lambda i: (0, 0)),
        ],
        out_specs=pl.BlockSpec((tb, _D_OUT_PAD), lambda i: (i, 0)),
        compiler_params=pltpu.CompilerParams(
            dimension_semantics=("parallel",),
            vmem_limit_bytes=48 * 1024 * 1024,   # headroom for large tb on v5e
        ),
        cost_estimate=pl.CostEstimate(
            flops=flops, transcendentals=0, bytes_accessed=bytes_accessed),
    )(x, w1_p, w2_p, w3_p)

    # Drop padded lanes; partial-last-block garbage rows never exist in the
    # output array (OOB writes are masked), so no batch slice is needed.
    return out_padded[:, :_D_OUT].astype(x.dtype)


def _init_linear_weight(key, in_features, out_features):
    # nn.Linear default init: U(-1/sqrt(in), 1/sqrt(in)), W is (out, in);
    # stored transposed as (in, out) for the kernel.
    bound = 1.0 / jnp.sqrt(jnp.float32(in_features))
    w = jax.random.uniform(
        key, (out_features, in_features), jnp.float32, -bound, bound
    )
    return w.T  # (in, out)


def _reference(x, w1, w2, w3):
    h = jnp.maximum(x @ w1, 0.0)
    h = jnp.maximum(h @ w2, 0.0)
    return h @ w3


if __name__ == "__main__":
    key = jax.random.PRNGKey(0)
    kx, k1, k2, k3, kx2 = jax.random.split(key, 5)

    w1 = _init_linear_weight(k1, 256, 300)   # (256, 300)
    w2 = _init_linear_weight(k2, 300, 300)   # (300, 300)
    w3 = _init_linear_weight(k3, 300, 10)    # (300, 10)

    # Small-batch case (single block).
    B = 8
    x = jax.random.normal(kx, (B, 256), jnp.float32)
    out = jax.block_until_ready(class_relu_forward(x, w1, w2, w3))
    ref = _reference(x, w1, w2, w3)
    assert out.shape == (B, 10)
    # bf16 weights/activations in the kernel shift results at the ~1e-2 level.
    assert jnp.allclose(out, ref, atol=5e-2, rtol=5e-2)

    # Larger batch exercising the multi-step grid with a partial last block.
    B2 = 300
    x2 = jax.random.normal(kx2, (B2, 256), jnp.float32)
    out2 = jax.block_until_ready(class_relu_forward(x2, w1, w2, w3))
    ref2 = _reference(x2, w1, w2, w3)
    assert out2.shape == (B2, 10)
    assert jnp.allclose(out2, ref2, atol=5e-2, rtol=5e-2)

    print("KERNEL_OK")
</pallas_src>

<mosaic_0001>
module attributes {stable_mosaic.version = 11 : i64} {
  func.func @_mlp_kernel(%arg0: i32, %arg1: memref<8x256xf32, #tpu.memory_space<vmem>>, %arg2: memref<256x384xbf16, #tpu.memory_space<vmem>>, %arg3: memref<384x384xbf16, #tpu.memory_space<vmem>>, %arg4: memref<384x128xbf16, #tpu.memory_space<vmem>>, %arg5: memref<8x128xf32, #tpu.memory_space<vmem>>) attributes {dimension_semantics = [#tpu.dimension_semantics<parallel>], iteration_bounds = array<i64: 1>, scalar_prefetch = 0 : i64, scratch_operands = 0 : i64, tpu.core_type = #tpu.core_type<tc>, window_params = [{transform_indices = @transform_0, window_bounds = array<i64: 8, 256>}, {pipeline_mode = #tpu.pipeline_mode<synchronous>, transform_indices = @transform_1, window_bounds = array<i64: 256, 384>}, {pipeline_mode = #tpu.pipeline_mode<synchronous>, transform_indices = @transform_2, window_bounds = array<i64: 384, 384>}, {pipeline_mode = #tpu.pipeline_mode<synchronous>, transform_indices = @transform_3, window_bounds = array<i64: 384, 128>}, {transform_indices = @transform_4, window_bounds = array<i64: 8, 128>}]} {
    %c0 = arith.constant 0 : index
    %c0_0 = arith.constant 0 : index
    %0 = vector.load %arg1[%c0, %c0_0] : memref<8x256xf32, #tpu.memory_space<vmem>>, vector<8x256xf32>
    %1 = arith.truncf %0 : vector<8x256xf32> to vector<8x256xbf16>
    %c0_1 = arith.constant 0 : index
    %c0_2 = arith.constant 0 : index
    %2 = vector.load %arg2[%c0_1, %c0_2] : memref<256x384xbf16, #tpu.memory_space<vmem>>, vector<256x384xbf16>
    %cst = arith.constant dense<0.000000e+00> : vector<8x384xf32>
    %3 = tpu.matmul %1, %2, %cst {dimension_numbers = #tpu.dot_dimension_numbers<[1], [0], [0], [1], [0, 0, 1, 1], [], []>} : vector<8x256xbf16>, vector<256x384xbf16>, vector<8x384xf32> -> vector<8x384xf32>
    %4 = arith.truncf %3 : vector<8x384xf32> to vector<8x384xbf16>
    %cst_3 = arith.constant 0.000000e+00 : bf16
    %5 = vector.broadcast %cst_3 : bf16 to vector<8x384xbf16>
    %6 = arith.maximumf %4, %5 : vector<8x384xbf16>
    %c0_4 = arith.constant 0 : index
    %c0_5 = arith.constant 0 : index
    %7 = vector.load %arg3[%c0_4, %c0_5] : memref<384x384xbf16, #tpu.memory_space<vmem>>, vector<384x384xbf16>
    %cst_6 = arith.constant dense<0.000000e+00> : vector<8x384xf32>
    %8 = tpu.matmul %6, %7, %cst_6 {dimension_numbers = #tpu.dot_dimension_numbers<[1], [0], [0], [1], [0, 0, 1, 1], [], []>} : vector<8x384xbf16>, vector<384x384xbf16>, vector<8x384xf32> -> vector<8x384xf32>
    %9 = arith.truncf %8 : vector<8x384xf32> to vector<8x384xbf16>
    %cst_7 = arith.constant 0.000000e+00 : bf16
    %10 = vector.broadcast %cst_7 : bf16 to vector<8x384xbf16>
    %11 = arith.maximumf %9, %10 : vector<8x384xbf16>
    %c0_8 = arith.constant 0 : index
    %c0_9 = arith.constant 0 : index
    %12 = vector.load %arg4[%c0_8, %c0_9] : memref<384x128xbf16, #tpu.memory_space<vmem>>, vector<384x128xbf16>
    %cst_10 = arith.constant dense<0.000000e+00> : vector<8x128xf32>
    %13 = tpu.matmul %11, %12, %cst_10 {dimension_numbers = #tpu.dot_dimension_numbers<[1], [0], [0], [1], [0, 0, 1, 1], [], []>} : vector<8x384xbf16>, vector<384x128xbf16>, vector<8x128xf32> -> vector<8x128xf32>
    %c0_11 = arith.constant 0 : index
    %c0_12 = arith.constant 0 : index
    %14 = vector.load %arg5[%c0_11, %c0_12] : memref<8x128xf32, #tpu.memory_space<vmem>>, vector<8x128xf32>
    tpu.vector_store %arg5[%c0_11, %c0_12], %13 {strides = array<i32>} : memref<8x128xf32, #tpu.memory_space<vmem>>, vector<8x128xf32>,
    return
  }
  func.func @transform_0(%arg0: i32) -> (i32, i32) {
    %c0_i32 = arith.constant 0 : i32
    %c0_i32_0 = arith.constant 0 : i32
    return %arg0, %c0_i32 : i32, i32
  }
  func.func @transform_1(%arg0: i32) -> (i32, i32) {
    %c0_i32 = arith.constant 0 : i32
    %c0_i32_0 = arith.constant 0 : i32
    %c0_i32_1 = arith.constant 0 : i32
    return %c0_i32, %c0_i32_0 : i32, i32
  }
  func.func @transform_2(%arg0: i32) -> (i32, i32) {
    %c0_i32 = arith.constant 0 : i32
    %c0_i32_0 = arith.constant 0 : i32
    %c0_i32_1 = arith.constant 0 : i32
    return %c0_i32, %c0_i32_0 : i32, i32
  }
  func.func @transform_3(%arg0: i32) -> (i32, i32) {
    %c0_i32 = arith.constant 0 : i32
    %c0_i32_0 = arith.constant 0 : i32
    %c0_i32_1 = arith.constant 0 : i32
    return %c0_i32, %c0_i32_0 : i32, i32
  }
  func.func @transform_4(%arg0: i32) -> (i32, i32) {
    %c0_i32 = arith.constant 0 : i32
    %c0_i32_0 = arith.constant 0 : i32
    return %arg0, %c0_i32 : i32, i32
  }
}

</mosaic_0001>

<llo_original>
// kernel: class_relu_forward.1
$region0: #{class_relu_forward.1}
  #allocation0 [shape = 'u32[]', space=smem, size = 0x4, offset = 0x4, fixed_abs, tag = 'smem constant byte address 0x4 - core index']
  #allocation1 [shape = 'u32[72,128]{1,0:T(1,128)}', space=vmem, size = 0x9000, scoped, tag = 'internal scratch']
  %s0 = inlined_call_operand.vmem [shape: f32[8,256], index: 0, kind: input, shape index: {}]
  %s1 = inlined_call_operand.vmem [shape: bf16[256,384], index: 1, kind: input, shape index: {}]
  %s2 = inlined_call_operand.vmem [shape: bf16[384,384], index: 2, kind: input, shape index: {}]
  %s3 = inlined_call_operand.vmem [shape: bf16[384,128], index: 3, kind: input, shape index: {}]
  %s4 = inlined_call_operand.hbm [shape: f32[8,128], index: 4, kind: output, shape index: {}]
  %s5 = sld [smem:[#allocation0]]
  $region26: #{class_relu_forward.1} parent=0
    _
  %s7 = ssub.s32 1, %s5
  %s8 = scalar_select 0, %s7, %s5
  $region1: #{class_relu_forward.1} parent=0
    #allocation2 [shape = 'u8[4096]{0}', space=vmem, size = 0x1000, scoped, tag = 'output window, operand 0, single buffered']
    #allocation3 [shape = 's32[1]{0}', space=sflag, size = 0x4, scoped, tag = 'scoped memory for class_relu_forward.1']
    %9 = vsyncpa [#allocation3], 0
    // Predicated region
    $region2: #{class_relu_forward.1} parent=1 // pred_check
      _
    $region3: #{class_relu_forward.1} parent=1 // pred_check_branch
      %11 = sbr.rel (0) target = $region5
    $region4: #{class_relu_forward.1} parent=1 // pred_region
      _
    $region5: #{class_relu_forward.1} parent=1 // pred_fallthru
      _
    // Predicated region
    $region6: #{class_relu_forward.1} parent=1 // pred_check
      _
    $region7: #{class_relu_forward.1} parent=1 // pred_check_branch
      %13 = sbr.rel (0) target = $region9
    $region8: #{class_relu_forward.1} parent=1 // pred_region
      _
    $region9: #{class_relu_forward.1} parent=1 // pred_fallthru
      _
    // Predicated region
    $region10: #{class_relu_forward.1} parent=1 // pred_check
      _
    $region11: #{class_relu_forward.1} parent=1 // pred_check_branch
      %15 = sbr.rel (0) target = $region13
    $region12: #{class_relu_forward.1} parent=1 // pred_region
      _
    $region13: #{class_relu_forward.1} parent=1 // pred_fallthru
      _
    // Predicated region
    $region14: #{class_relu_forward.1} parent=1 // pred_check
      _
    $region15: #{class_relu_forward.1} parent=1 // pred_check_branch
      %17 = sbr.rel (0) target = $region17
    $region16: #{class_relu_forward.1} parent=1 // pred_region
      _
    $region17: #{class_relu_forward.1} parent=1 // pred_fallthru
      _
    %v18 = vld [vmem:[%s0] sm:$0xff]
    %v19 = vld [vmem:[%s0 + $0x8] sm:$0xff]
    %v20 = vpack.c.bf16 %v18, %v18
    %v21 = vpack.c.bf16 %v19, %v19
    %v22 = vld [vmem:[%s1] sm:$0xff]
    %v23 = vld [vmem:[%s1 + $0x8] sm:$0xf]
    %v24 = vld [vmem:[%s1 + $0xc] sm:$0xff]
    %v25 = vld [vmem:[%s1 + $0x14] sm:$0xf]
    %v26 = vld [vmem:[%s1 + $0x18] sm:$0xff]
    %v27 = vld [vmem:[%s1 + $0x20] sm:$0xf]
    %v28 = vld [vmem:[%s1 + $0x24] sm:$0xff]
    %v29 = vld [vmem:[%s1 + $0x2c] sm:$0xf]
    %v30 = vld [vmem:[%s1 + $0x30] sm:$0xff]
    %v31 = vld [vmem:[%s1 + $0x38] sm:$0xf]
    %v32 = vld [vmem:[%s1 + $0x3c] sm:$0xff]
    %v33 = vld [vmem:[%s1 + $0x44] sm:$0xf]
    %v34 = vld [vmem:[%s1 + $0x48] sm:$0xff]
    %v35 = vld [vmem:[%s1 + $0x50] sm:$0xf]
    %v36 = vld [vmem:[%s1 + $0x54] sm:$0xff]
    %v37 = vld [vmem:[%s1 + $0x5c] sm:$0xf]
    %v38 = vld [vmem:[%s1 + $0x60] sm:$0xff]
    %v39 = vld [vmem:[%s1 + $0x68] sm:$0xf]
    %v40 = vld [vmem:[%s1 + $0x6c] sm:$0xff]
    %v41 = vld [vmem:[%s1 + $0x74] sm:$0xf]
    %v42 = vld [vmem:[%s1 + $0x78] sm:$0xff]
    %v43 = vld [vmem:[%s1 + $0x80] sm:$0xf]
    %v44 = vld [vmem:[%s1 + $0x84] sm:$0xff]
    %v45 = vld [vmem:[%s1 + $0x8c] sm:$0xf]
    %v46 = vld [vmem:[%s1 + $0x90] sm:$0xff]
    %v47 = vld [vmem:[%s1 + $0x98] sm:$0xf]
    %v48 = vld [vmem:[%s1 + $0x9c] sm:$0xff]
    %v49 = vld [vmem:[%s1 + $0xa4] sm:$0xf]
    %v50 = vld [vmem:[%s1 + $0xa8] sm:$0xff]
    %v51 = vld [vmem:[%s1 + $0xb0] sm:$0xf]
    %v52 = vld [vmem:[%s1 + $0xb4] sm:$0xff]
    %v53 = vld [vmem:[%s1 + $0xbc] sm:$0xf]
    %v54 = vld [vmem:[%s1 + $0xc0] sm:$0xff]
    %v55 = vld [vmem:[%s1 + $0xc8] sm:$0xf]
    %v56 = vld [vmem:[%s1 + $0xcc] sm:$0xff]
    %v57 = vld [vmem:[%s1 + $0xd4] sm:$0xf]
    %v58 = vld [vmem:[%s1 + $0xd8] sm:$0xff]
    %v59 = vld [vmem:[%s1 + $0xe0] sm:$0xf]
    %v60 = vld [vmem:[%s1 + $0xe4] sm:$0xff]
    %v61 = vld [vmem:[%s1 + $0xec] sm:$0xf]
    %v62 = vld [vmem:[%s1 + $0xf0] sm:$0xff]
    %v63 = vld [vmem:[%s1 + $0xf8] sm:$0xf]
    %v64 = vld [vmem:[%s1 + $0xfc] sm:$0xff]
    %v65 = vld [vmem:[%s1 + $0x104] sm:$0xf]
    %v66 = vld [vmem:[%s1 + $0x108] sm:$0xff]
    %v67 = vld [vmem:[%s1 + $0x110] sm:$0xf]
    %v68 = vld [vmem:[%s1 + $0x114] sm:$0xff]
    %v69 = vld [vmem:[%s1 + $0x11c] sm:$0xf]
    %v70 = vld [vmem:[%s1 + $0x120] sm:$0xff]
    %v71 = vld [vmem:[%s1 + $0x128] sm:$0xf]
    %v72 = vld [vmem:[%s1 + $0x12c] sm:$0xff]
    %v73 = vld [vmem:[%s1 + $0x134] sm:$0xf]
    %v74 = vld [vmem:[%s1 + $0x138] sm:$0xff]
    %v75 = vld [vmem:[%s1 + $0x140] sm:$0xf]
    %v76 = vld [vmem:[%s1 + $0x144] sm:$0xff]
    %v77 = vld [vmem:[%s1 + $0x14c] sm:$0xf]
    %v78 = vld [vmem:[%s1 + $0x150] sm:$0xff]
    %v79 = vld [vmem:[%s1 + $0x158] sm:$0xf]
    %v80 = vld [vmem:[%s1 + $0x15c] sm:$0xff]
    %v81 = vld [vmem:[%s1 + $0x164] sm:$0xf]
    %v82 = vld [vmem:[%s1 + $0x168] sm:$0xff]
    %v83 = vld [vmem:[%s1 + $0x170] sm:$0xf]
    %v84 = vld [vmem:[%s1 + $0x174] sm:$0xff]
    %v85 = vld [vmem:[%s1 + $0x17c] sm:$0xf]
    %v150 = vunpack.c.l.b16 %v22
    %v151 = vunpack.c.h.b16 %v22
    %v152 = vunpack.c.l.b16 %v23
    %v153 = vunpack.c.l.b16 %v24
    %v154 = vunpack.c.h.b16 %v24
    %v155 = vunpack.c.l.b16 %v25
    %v156 = vunpack.c.l.b16 %v26
    %v157 = vunpack.c.h.b16 %v26
    %v158 = vunpack.c.l.b16 %v27
    %v159 = vunpack.c.l.b16 %v28
    %v160 = vunpack.c.h.b16 %v28
    %v161 = vunpack.c.l.b16 %v29
    %v162 = vunpack.c.l.b16 %v30
    %v163 = vunpack.c.h.b16 %v30
    %v164 = vunpack.c.l.b16 %v31
    %v165 = vunpack.c.l.b16 %v32
    %v166 = vunpack.c.h.b16 %v32
    %v167 = vunpack.c.l.b16 %v33
    %v168 = vunpack.c.l.b16 %v34
    %v169 = vunpack.c.h.b16 %v34
    %v170 = vunpack.c.l.b16 %v35
    %v171 = vunpack.c.l.b16 %v36
    %v172 = vunpack.c.h.b16 %v36
    %v173 = vunpack.c.l.b16 %v37
    %v174 = vunpack.c.l.b16 %v38
    %v175 = vunpack.c.h.b16 %v38
    %v176 = vunpack.c.l.b16 %v39
    %v177 = vunpack.c.l.b16 %v40
    %v178 = vunpack.c.h.b16 %v40
    %v179 = vunpack.c.l.b16 %v41
    %v180 = vunpack.c.l.b16 %v42
    %v181 = vunpack.c.h.b16 %v42
    %v182 = vunpack.c.l.b16 %v43
    %v183 = vunpack.c.l.b16 %v44
    %v184 = vunpack.c.h.b16 %v44
    %v185 = vunpack.c.l.b16 %v45
    %v186 = vunpack.c.l.b16 %v46
    %v187 = vunpack.c.h.b16 %v46
    %v188 = vunpack.c.l.b16 %v47
    %v189 = vunpack.c.l.b16 %v48
    %v190 = vunpack.c.h.b16 %v48
    %v191 = vunpack.c.l.b16 %v49
    %v192 = vunpack.c.l.b16 %v50
    %v193 = vunpack.c.h.b16 %v50
    %v194 = vunpack.c.l.b16 %v51
    %v195 = vunpack.c.l.b16 %v52
    %v196 = vunpack.c.h.b16 %v52
    %v197 = vunpack.c.l.b16 %v53
    %v198 = vunpack.c.l.b16 %v54
    %v199 = vunpack.c.h.b16 %v54
    %v200 = vunpack.c.l.b16 %v55
    %v201 = vunpack.c.l.b16 %v56
    %v202 = vunpack.c.h.b16 %v56
    %v203 = vunpack.c.l.b16 %v57
    %v204 = vunpack.c.l.b16 %v58
    %v205 = vunpack.c.h.b16 %v58
    %v206 = vunpack.c.l.b16 %v59
    %v207 = vunpack.c.l.b16 %v60
    %v208 = vunpack.c.h.b16 %v60
    %v209 = vunpack.c.l.b16 %v61
    %v210 = vunpack.c.l.b16 %v62
    %v211 = vunpack.c.h.b16 %v62
    %v212 = vunpack.c.l.b16 %v63
    %v213 = vunpack.c.l.b16 %v64
    %v214 = vunpack.c.h.b16 %v64
    %v215 = vunpack.c.l.b16 %v65
    %v216 = vunpack.c.l.b16 %v66
    %v217 = vunpack.c.h.b16 %v66
    %v218 = vunpack.c.l.b16 %v67
    %v219 = vunpack.c.l.b16 %v68
    %v220 = vunpack.c.h.b16 %v68
    %v221 = vunpack.c.l.b16 %v69
    %v222 = vunpack.c.l.b16 %v70
    %v223 = vunpack.c.h.b16 %v70
    %v224 = vunpack.c.l.b16 %v71
    %v225 = vunpack.c.l.b16 %v72
    %v226 = vunpack.c.h.b16 %v72
    %v227 = vunpack.c.l.b16 %v73
    %v228 = vunpack.c.l.b16 %v74
    %v229 = vunpack.c.h.b16 %v74
    %v230 = vunpack.c.l.b16 %v75
    %v231 = vunpack.c.l.b16 %v76
    %v232 = vunpack.c.h.b16 %v76
    %v233 = vunpack.c.l.b16 %v77
    %v234 = vunpack.c.l.b16 %v78
    %v235 = vunpack.c.h.b16 %v78
    %v236 = vunpack.c.l.b16 %v79
    %v237 = vunpack.c.l.b16 %v80
    %v238 = vunpack.c.h.b16 %v80
    %v239 = vunpack.c.l.b16 %v81
    %v240 = vunpack.c.l.b16 %v82
    %v241 = vunpack.c.h.b16 %v82
    %v242 = vunpack.c.l.b16 %v83
    %v243 = vunpack.c.l.b16 %v84
    %v244 = vunpack.c.h.b16 %v84
    %v245 = vunpack.c.l.b16 %v85
    %v246 = vpack.c.b16 %v153, %v150
    %v247 = vpack.c.b16 %v154, %v151
    %v248 = vpack.c.b16 %v155, %v152
    %v249 = vpack.c.b16 %v159, %v156
    %v250 = vpack.c.b16 %v160, %v157
    %v251 = vpack.c.b16 %v161, %v158
    %v252 = vpack.c.b16 %v165, %v162
    %v253 = vpack.c.b16 %v166, %v163
    %v254 = vpack.c.b16 %v167, %v164
    %v255 = vpack.c.b16 %v171, %v168
    %v256 = vpack.c.b16 %v172, %v169
    %v257 = vpack.c.b16 %v173, %v170
    %v258 = vpack.c.b16 %v177, %v174
    %v259 = vpack.c.b16 %v178, %v175
    %v260 = vpack.c.b16 %v179, %v176
    %v261 = vpack.c.b16 %v183, %v180
    %v262 = vpack.c.b16 %v184, %v181
    %v263 = vpack.c.b16 %v185, %v182
    %v264 = vpack.c.b16 %v189, %v186
    %v265 = vpack.c.b16 %v190, %v187
    %v266 = vpack.c.b16 %v191, %v188
    %v267 = vpack.c.b16 %v195, %v192
    %v268 = vpack.c.b16 %v196, %v193
    %v269 = vpack.c.b16 %v197, %v194
    %v270 = vpack.c.b16 %v201, %v198
    %v271 = vpack.c.b16 %v202, %v199
    %v272 = vpack.c.b16 %v203, %v200
    %v273 = vpack.c.b16 %v207, %v204
    %v274 = vpack.c.b16 %v208, %v205
    %v275 = vpack.c.b16 %v209, %v206
    %v276 = vpack.c.b16 %v213, %v210
    %v277 = vpack.c.b16 %v214, %v211
    %v278 = vpack.c.b16 %v215, %v212
    %v279 = vpack.c.b16 %v219, %v216
    %v280 = vpack.c.b16 %v220, %v217
    %v281 = vpack.c.b16 %v221, %v218
    %v282 = vpack.c.b16 %v225, %v222
    %v283 = vpack.c.b16 %v226, %v223
    %v284 = vpack.c.b16 %v227, %v224
    %v285 = vpack.c.b16 %v231, %v228
    %v286 = vpack.c.b16 %v232, %v229
    %v287 = vpack.c.b16 %v233, %v230
    %v288 = vpack.c.b16 %v237, %v234
    %v289 = vpack.c.b16 %v238, %v235
    %v290 = vpack.c.b16 %v239, %v236
    %v291 = vpack.c.b16 %v243, %v240
    %v292 = vpack.c.b16 %v244, %v241
    %v293 = vpack.c.b16 %v245, %v242
    %342 = vmatpush.bf16.msra.mxu0 %v267
    %343 = vmatpush.bf16.msra.mxu0 %v264
    %344 = vmatpush.bf16.msra.mxu0 %v261
    %345 = vmatpush.bf16.msra.mxu0 %v258
    %346 = vmatpush.bf16.msra.mxu0 %v255
    %347 = vmatpush.bf16.msra.mxu0 %v252
    %348 = vmatpush.bf16.msra.mxu0 %v249
    %349 = vmatpush.bf16.msra.mxu0 %v246
    %350 = vmatmul.bf16.gmra.mxu0 %v20
    %v351 = vpop.f32.mrf.mxu0
    %v352 = vadd.f32 0.0, %v351
    %v353 = vpop.f32.mrf.mxu0
    %354 = vdwg.mxu0
    %355 = vmatpush.bf16.msra.mxu0 %v291
    %356 = vmatpush.bf16.msra.mxu0 %v288
    %357 = vmatpush.bf16.msra.mxu0 %v285
    %358 = vmatpush.bf16.msra.mxu0 %v282
    %359 = vmatpush.bf16.msra.mxu0 %v279
    %360 = vmatpush.bf16.msra.mxu0 %v276
    %361 = vmatpush.bf16.msra.mxu0 %v273
    %362 = vmatpush.bf16.msra.mxu0 %v270
    %363 = vmatmul.bf16.gmra.mxu0 %v21
    %v364 = vpop.f32.mrf.mxu0
    %v365 = vadd.f32 %v352, %v364
    %v366 = vpop.f32.mrf.mxu0
    %367 = vdwg.mxu0
    %368 = vmatpush.bf16.msra.mxu0 %v268
    %369 = vmatpush.bf16.msra.mxu0 %v265
    %370 = vmatpush.bf16.msra.mxu0 %v262
    %371 = vmatpush.bf16.msra.mxu0 %v259
    %372 = vmatpush.bf16.msra.mxu0 %v256
    %373 = vmatpush.bf16.msra.mxu0 %v253
    %374 = vmatpush.bf16.msra.mxu0 %v250
    %375 = vmatpush.bf16.msra.mxu0 %v247
    %376 = vmatmul.bf16.gmra.mxu0 %v20
    %v377 = vpop.f32.mrf.mxu0
    %v378 = vadd.f32 0.0, %v377
    %v379 = vpop.f32.mrf.mxu0
    %380 = vdwg.mxu0
    %381 = vmatpush.bf16.msra.mxu0 %v292
    %382 = vmatpush.bf16.msra.mxu0 %v289
    %383 = vmatpush.bf16.msra.mxu0 %v286
    %384 = vmatpush.bf16.msra.mxu0 %v283
    %385 = vmatpush.bf16.msra.mxu0 %v280
    %386 = vmatpush.bf16.msra.mxu0 %v277
    %387 = vmatpush.bf16.msra.mxu0 %v274
    %388 = vmatpush.bf16.msra.mxu0 %v271
    %389 = vmatmul.bf16.gmra.mxu0 %v21
    %v390 = vpop.f32.mrf.mxu0
    %v391 = vadd.f32 %v378, %v390
    %v392 = vpop.f32.mrf.mxu0
    %393 = vdwg.mxu0
    %394 = vmatpush.bf16.msra.mxu0 %v269
    %395 = vmatpush.bf16.msra.mxu0 %v266
    %396 = vmatpush.bf16.msra.mxu0 %v263
    %397 = vmatpush.bf16.msra.mxu0 %v260
    %398 = vmatpush.bf16.msra.mxu0 %v257
    %399 = vmatpush.bf16.msra.mxu0 %v254
    %400 = vmatpush.bf16.msra.mxu0 %v251
    %401 = vmatpush.bf16.msra.mxu0 %v248
    %402 = vmatmul.bf16.gmra.mxu0 %v20
    %v403 = vpop.f32.mrf.mxu0
    %v404 = vadd.f32 0.0, %v403
    %v405 = vpop.f32.mrf.mxu0
    %406 = vdwg.mxu0
    %407 = vmatpush.bf16.msra.mxu0 %v293
    %408 = vmatpush.bf16.msra.mxu0 %v290
    %409 = vmatpush.bf16.msra.mxu0 %v287
    %410 = vmatpush.bf16.msra.mxu0 %v284
    %411 = vmatpush.bf16.msra.mxu0 %v281
    %412 = vmatpush.bf16.msra.mxu0 %v278
    %413 = vmatpush.bf16.msra.mxu0 %v275
    %414 = vmatpush.bf16.msra.mxu0 %v272
    %415 = vmatmul.bf16.gmra.mxu0 %v21
    %v416 = vpop.f32.mrf.mxu0
    %v417 = vadd.f32 %v404, %v416
    %v418 = vpop.f32.mrf.mxu0
    %419 = vdwg.mxu0
    %v420 = vpack.c.bf16 %v391, %v365
    %v421 = vpack.c.bf16 %v417, %v417
    %v422 = vunpack.c.l.bf16 %v420
    %v423 = vunpack.c.h.bf16 %v420
    %v424 = vunpack.c.l.bf16 %v421
    %v425 = vmax.f32 %v422, 0.0
    %v426 = vmax.f32 %v423, 0.0
    %v427 = vmax.f32 %v424, 0.0
    %v428 = vpack.c.bf16 %v425, %v425
    %v429 = vpack.c.bf16 %v426, %v426
    %v430 = vpack.c.bf16 %v427, %v427
    %v431 = vld [vmem:[%s2] sm:$0xff]
    %v432 = vld [vmem:[%s2 + $0x8] sm:$0xf]
    %v433 = vld [vmem:[%s2 + $0xc] sm:$0xff]
    %v434 = vld [vmem:[%s2 + $0x14] sm:$0xf]
    %v435 = vld [vmem:[%s2 + $0x18] sm:$0xff]
    %v436 = vld [vmem:[%s2 + $0x20] sm:$0xf]
    %v437 = vld [vmem:[%s2 + $0x24] sm:$0xff]
    %v438 = vld [vmem:[%s2 + $0x2c] sm:$0xf]
    %v439 = vld [vmem:[%s2 + $0x30] sm:$0xff]
    %v440 = vld [vmem:[%s2 + $0x38] sm:$0xf]
    %v441 = vld [vmem:[%s2 + $0x3c] sm:$0xff]
    %v442 = vld [vmem:[%s2 + $0x44] sm:$0xf]
    %v443 = vld [vmem:[%s2 + $0x48] sm:$0xff]
    %v444 = vld [vmem:[%s2 + $0x50] sm:$0xf]
    %v445 = vld [vmem:[%s2 + $0x54] sm:$0xff]
    %v446 = vld [vmem:[%s2 + $0x5c] sm:$0xf]
    %v447 = vld [vmem:[%s2 + $0x60] sm:$0xff]
    %v448 = vld [vmem:[%s2 + $0x68] sm:$0xf]
    %v449 = vld [vmem:[%s2 + $0x6c] sm:$0xff]
    %v450 = vld [vmem:[%s2 + $0x74] sm:$0xf]
    %v451 = vld [vmem:[%s2 + $0x78] sm:$0xff]
    %v452 = vld [vmem:[%s2 + $0x80] sm:$0xf]
    %v453 = vld [vmem:[%s2 + $0x84] sm:$0xff]
    %v454 = vld [vmem:[%s2 + $0x8c] sm:$0xf]
    %v455 = vld [vmem:[%s2 + $0x90] sm:$0xff]
    %v456 = vld [vmem:[%s2 + $0x98] sm:$0xf]
    %v457 = vld [vmem:[%s2 + $0x9c] sm:$0xff]
    %v458 = vld [vmem:[%s2 + $0xa4] sm:$0xf]
    %v459 = vld [vmem:[%s2 + $0xa8] sm:$0xff]
    %v460 = vld [vmem:[%s2 + $0xb0] sm:$0xf]
    %v461 = vld [vmem:[%s2 + $0xb4] sm:$0xff]
    %v462 = vld [vmem:[%s2 + $0xbc] sm:$0xf]
    %v463 = vld [vmem:[%s2 + $0xc0] sm:$0xff]
    %v464 = vld [vmem:[%s2 + $0xc8] sm:$0xf]
    %v465 = vld [vmem:[%s2 + $0xcc] sm:$0xff]
    %v466 = vld [vmem:[%s2 + $0xd4] sm:$0xf]
    %v467 = vld [vmem:[%s2 + $0xd8] sm:$0xff]
    %v468 = vld [vmem:[%s2 + $0xe0] sm:$0xf]
    %v469 = vld [vmem:[%s2 + $0xe4] sm:$0xff]
    %v470 = vld [vmem:[%s2 + $0xec] sm:$0xf]
    %v471 = vld [vmem:[%s2 + $0xf0] sm:$0xff]
    %v472 = vld [vmem:[%s2 + $0xf8] sm:$0xf]
    %v473 = vld [vmem:[%s2 + $0xfc] sm:$0xff]
    %v474 = vld [vmem:[%s2 + $0x104] sm:$0xf]
    %v475 = vld [vmem:[%s2 + $0x108] sm:$0xff]
    %v476 = vld [vmem:[%s2 + $0x110] sm:$0xf]
    %v477 = vld [vmem:[%s2 + $0x114] sm:$0xff]
    %v478 = vld [vmem:[%s2 + $0x11c] sm:$0xf]
    %v479 = vld [vmem:[%s2 + $0x120] sm:$0xff]
    %v480 = vld [vmem:[%s2 + $0x128] sm:$0xf]
    %v481 = vld [vmem:[%s2 + $0x12c] sm:$0xff]
    %v482 = vld [vmem:[%s2 + $0x134] sm:$0xf]
    %v483 = vld [vmem:[%s2 + $0x138] sm:$0xff]
    %v484 = vld [vmem:[%s2 + $0x140] sm:$0xf]
    %v485 = vld [vmem:[%s2 + $0x144] sm:$0xff]
    %v486 = vld [vmem:[%s2 + $0x14c] sm:$0xf]
    %v487 = vld [vmem:[%s2 + $0x150] sm:$0xff]
    %v488 = vld [vmem:[%s2 + $0x158] sm:$0xf]
    %v489 = vld [vmem:[%s2 + $0x15c] sm:$0xff]
    %v490 = vld [vmem:[%s2 + $0x164] sm:$0xf]
    %v491 = vld [vmem:[%s2 + $0x168] sm:$0xff]
    %v492 = vld [vmem:[%s2 + $0x170] sm:$0xf]
    %v493 = vld [vmem:[%s2 + $0x174] sm:$0xff]
    %v494 = vld [vmem:[%s2 + $0x17c] sm:$0xf]
    %v495 = vld [vmem:[%s2 + $0x180] sm:$0xff]
    %v496 = vld [vmem:[%s2 + $0x188] sm:$0xf]
    %v497 = vld [vmem:[%s2 + $0x18c] sm:$0xff]
    %v498 = vld [vmem:[%s2 + $0x194] sm:$0xf]
    %v499 = vld [vmem:[%s2 + $0x198] sm:$0xff]
    %v500 = vld [vmem:[%s2 + $0x1a0] sm:$0xf]
    %v501 = vld [vmem:[%s2 + $0x1a4] sm:$0xff]
    %v502 = vld [vmem:[%s2 + $0x1ac] sm:$0xf]
    %v503 = vld [vmem:[%s2 + $0x1b0] sm:$0xff]
    %v504 = vld [vmem:[%s2 + $0x1b8] sm:$0xf]
    %v505 = vld [vmem:[%s2 + $0x1bc] sm:$0xff]
    %v506 = vld [vmem:[%s2 + $0x1c4] sm:$0xf]
    %v507 = vld [vmem:[%s2 + $0x1c8] sm:$0xff]
    %v508 = vld [vmem:[%s2 + $0x1d0] sm:$0xf]
    %v509 = vld [vmem:[%s2 + $0x1d4] sm:$0xff]
    %v510 = vld [vmem:[%s2 + $0x1dc] sm:$0xf]
    %v511 = vld [vmem:[%s2 + $0x1e0] sm:$0xff]
    %v512 = vld [vmem:[%s2 + $0x1e8] sm:$0xf]
    %v513 = vld [vmem:[%s2 + $0x1ec] sm:$0xff]
    %v514 = vld [vmem:[%s2 + $0x1f4] sm:$0xf]
    %v515 = vld [vmem:[%s2 + $0x1f8] sm:$0xff]
    %v516 = vld [vmem:[%s2 + $0x200] sm:$0xf]
    %v517 = vld [vmem:[%s2 + $0x204] sm:$0xff]
    %v518 = vld [vmem:[%s2 + $0x20c] sm:$0xf]
    %v519 = vld [vmem:[%s2 + $0x210] sm:$0xff]
    %v520 = vld [vmem:[%s2 + $0x218] sm:$0xf]
    %v521 = vld [vmem:[%s2 + $0x21c] sm:$0xff]
    %v522 = vld [vmem:[%s2 + $0x224] sm:$0xf]
    %v523 = vld [vmem:[%s2 + $0x228] sm:$0xff]
    %v524 = vld [vmem:[%s2 + $0x230] sm:$0xf]
    %v525 = vld [vmem:[%s2 + $0x234] sm:$0xff]
    %v526 = vld [vmem:[%s2 + $0x23c] sm:$0xf]
    %v623 = vunpack.c.l.b16 %v431
    %v624 = vunpack.c.h.b16 %v431
    %v625 = vunpack.c.l.b16 %v432
    %v626 = vunpack.c.l.b16 %v433
    %v627 = vunpack.c.h.b16 %v433
    %v628 = vunpack.c.l.b16 %v434
    %v629 = vunpack.c.l.b16 %v435
    %v630 = vunpack.c.h.b16 %v435
    %v631 = vunpack.c.l.b16 %v436
    %v632 = vunpack.c.l.b16 %v437
    %v633 = vunpack.c.h.b16 %v437
    %v634 = vunpack.c.l.b16 %v438
    %v635 = vunpack.c.l.b16 %v439
    %v636 = vunpack.c.h.b16 %v439
    %v637 = vunpack.c.l.b16 %v440
    %v638 = vunpack.c.l.b16 %v441
    %v639 = vunpack.c.h.b16 %v441
    %v640 = vunpack.c.l.b16 %v442
    %v641 = vunpack.c.l.b16 %v443
    %v642 = vunpack.c.h.b16 %v443
    %v643 = vunpack.c.l.b16 %v444
    %v644 = vunpack.c.l.b16 %v445
    %v645 = vunpack.c.h.b16 %v445
    %v646 = vunpack.c.l.b16 %v446
    %v647 = vunpack.c.l.b16 %v447
    %v648 = vunpack.c.h.b16 %v447
    %v649 = vunpack.c.l.b16 %v448
    %v650 = vunpack.c.l.b16 %v449
    %v651 = vunpack.c.h.b16 %v449
    %v652 = vunpack.c.l.b16 %v450
    %v653 = vunpack.c.l.b16 %v451
    %v654 = vunpack.c.h.b16 %v451
    %v655 = vunpack.c.l.b16 %v452
    %v656 = vunpack.c.l.b16 %v453
    %v657 = vunpack.c.h.b16 %v453
    %v658 = vunpack.c.l.b16 %v454
    %v659 = vunpack.c.l.b16 %v455
    %v660 = vunpack.c.h.b16 %v455
    %v661 = vunpack.c.l.b16 %v456
    %v662 = vunpack.c.l.b16 %v457
    %v663 = vunpack.c.h.b16 %v457
    %v664 = vunpack.c.l.b16 %v458
    %v665 = vunpack.c.l.b16 %v459
    %v666 = vunpack.c.h.b16 %v459
    %v667 = vunpack.c.l.b16 %v460
    %v668 = vunpack.c.l.b16 %v461
    %v669 = vunpack.c.h.b16 %v461
    %v670 = vunpack.c.l.b16 %v462
    %v671 = vunpack.c.l.b16 %v463
    %v672 = vunpack.c.h.b16 %v463
    %v673 = vunpack.c.l.b16 %v464
    %v674 = vunpack.c.l.b16 %v465
    %v675 = vunpack.c.h.b16 %v465
    %v676 = vunpack.c.l.b16 %v466
    %v677 = vunpack.c.l.b16 %v467
    %v678 = vunpack.c.h.b16 %v467
    %v679 = vunpack.c.l.b16 %v468
    %v680 = vunpack.c.l.b16 %v469
    %v681 = vunpack.c.h.b16 %v469
    %v682 = vunpack.c.l.b16 %v470
    %v683 = vunpack.c.l.b16 %v471
    %v684 = vunpack.c.h.b16 %v471
    %v685 = vunpack.c.l.b16 %v472
    %v686 = vunpack.c.l.b16 %v473
    %v687 = vunpack.c.h.b16 %v473
    %v688 = vunpack.c.l.b16 %v474
    %v689 = vunpack.c.l.b16 %v475
    %v690 = vunpack.c.h.b16 %v475
    %v691 = vunpack.c.l.b16 %v476
    %v692 = vunpack.c.l.b16 %v477
    %v693 = vunpack.c.h.b16 %v477
    %v694 = vunpack.c.l.b16 %v478
    %v695 = vunpack.c.l.b16 %v479
    %v696 = vunpack.c.h.b16 %v479
    %v697 = vunpack.c.l.b16 %v480
    %v698 = vunpack.c.l.b16 %v481
    %v699 = vunpack.c.h.b16 %v481
    %v700 = vunpack.c.l.b16 %v482
    %v701 = vunpack.c.l.b16 %v483
    %v702 = vunpack.c.h.b16 %v483
    %v703 = vunpack.c.l.b16 %v484
    %v704 = vunpack.c.l.b16 %v485
    %v705 = vunpack.c.h.b16 %v485
    %v706 = vunpack.c.l.b16 %v486
    %v707 = vunpack.c.l.b16 %v487
    %v708 = vunpack.c.h.b16 %v487
    %v709 = vunpack.c.l.b16 %v488
    %v710 = vunpack.c.l.b16 %v489
    %v711 = vunpack.c.h.b16 %v489
    %v712 = vunpack.c.l.b16 %v490
    %v713 = vunpack.c.l.b16 %v491
    %v714 = vunpack.c.h.b16 %v491
    %v715 = vunpack.c.l.b16 %v492
    %v716 = vunpack.c.l.b16 %v493
    %v717 = vunpack.c.h.b16 %v493
    %v718 = vunpack.c.l.b16 %v494
    %v719 = vunpack.c.l.b16 %v495
    %v720 = vunpack.c.h.b16 %v495
    %v721 = vunpack.c.l.b16 %v496
    %v722 = vunpack.c.l.b16 %v497
    %v723 = vunpack.c.h.b16 %v497
    %v724 = vunpack.c.l.b16 %v498
    %v725 = vunpack.c.l.b16 %v499
    %v726 = vunpack.c.h.b16 %v499
    %v727 = vunpack.c.l.b16 %v500
    %v728 = vunpack.c.l.b16 %v501
    %v729 = vunpack.c.h.b16 %v501
    %v730 = vunpack.c.l.b16 %v502
    %v731 = vunpack.c.l.b16 %v503
    %v732 = vunpack.c.h.b16 %v503
    %v733 = vunpack.c.l.b16 %v504
    %v734 = vunpack.c.l.b16 %v505
    %v735 = vunpack.c.h.b16 %v505
    %v736 = vunpack.c.l.b16 %v506
    %v737 = vunpack.c.l.b16 %v507
    %v738 = vunpack.c.h.b16 %v507
    %v739 = vunpack.c.l.b16 %v508
    %v740 = vunpack.c.l.b16 %v509
    %v741 = vunpack.c.h.b16 %v509
    %v742 = vunpack.c.l.b16 %v510
    %v743 = vunpack.c.l.b16 %v511
    %v744 = vunpack.c.h.b16 %v511
    %v745 = vunpack.c.l.b16 %v512
    %v746 = vunpack.c.l.b16 %v513
    %v747 = vunpack.c.h.b16 %v513
    %v748 = vunpack.c.l.b16 %v514
    %v749 = vunpack.c.l.b16 %v515
    %v750 = vunpack.c.h.b16 %v515
    %v751 = vunpack.c.l.b16 %v516
    %v752 = vunpack.c.l.b16 %v517
    %v753 = vunpack.c.h.b16 %v517
    %v754 = vunpack.c.l.b16 %v518
    %v755 = vunpack.c.l.b16 %v519
    %v756 = vunpack.c.h.b16 %v519
    %v757 = vunpack.c.l.b16 %v520
    %v758 = vunpack.c.l.b16 %v521
    %v759 = vunpack.c.h.b16 %v521
    %v760 = vunpack.c.l.b16 %v522
    %v761 = vunpack.c.l.b16 %v523
    %v762 = vunpack.c.h.b16 %v523
    %v763 = vunpack.c.l.b16 %v524
    %v764 = vunpack.c.l.b16 %v525
    %v765 = vunpack.c.h.b16 %v525
    %v766 = vunpack.c.l.b16 %v526
    %v767 = vpack.c.b16 %v626, %v623
    %v768 = vpack.c.b16 %v627, %v624
    %v769 = vpack.c.b16 %v628, %v625
    %v770 = vpack.c.b16 %v632, %v629
    %v771 = vpack.c.b16 %v633, %v630
    %v772 = vpack.c.b16 %v634, %v631
    %v773 = vpack.c.b16 %v638, %v635
    %v774 = vpack.c.b16 %v639, %v636
    %v775 = vpack.c.b16 %v640, %v637
    %v776 = vpack.c.b16 %v644, %v641
    %v777 = vpack.c.b16 %v645, %v642
    %v778 = vpack.c.b16 %v646, %v643
    %v779 = vpack.c.b16 %v650, %v647
    %v780 = vpack.c.b16 %v651, %v648
    %v781 = vpack.c.b16 %v652, %v649
    %v782 = vpack.c.b16 %v656, %v653
    %v783 = vpack.c.b16 %v657, %v654
    %v784 = vpack.c.b16 %v658, %v655
    %v785 = vpack.c.b16 %v662, %v659
    %v786 = vpack.c.b16 %v663, %v660
    %v787 = vpack.c.b16 %v664, %v661
    %v788 = vpack.c.b16 %v668, %v665
    %v789 = vpack.c.b16 %v669, %v666
    %v790 = vpack.c.b16 %v670, %v667
    %v791 = vpack.c.b16 %v674, %v671
    %v792 = vpack.c.b16 %v675, %v672
    %v793 = vpack.c.b16 %v676, %v673
    %v794 = vpack.c.b16 %v680, %v677
    %v795 = vpack.c.b16 %v681, %v678
    %v796 = vpack.c.b16 %v682, %v679
    %v797 = vpack.c.b16 %v686, %v683
    %v798 = vpack.c.b16 %v687, %v684
    %v799 = vpack.c.b16 %v688, %v685
    %v800 = vpack.c.b16 %v692, %v689
    %v801 = vpack.c.b16 %v693, %v690
    %v802 = vpack.c.b16 %v694, %v691
    %v803 = vpack.c.b16 %v698, %v695
    %v804 = vpack.c.b16 %v699, %v696
    %v805 = vpack.c.b16 %v700, %v697
    %v806 = vpack.c.b16 %v704, %v701
    %v807 = vpack.c.b16 %v705, %v702
    %v808 = vpack.c.b16 %v706, %v703
    %v809 = vpack.c.b16 %v710, %v707
    %v810 = vpack.c.b16 %v711, %v708
    %v811 = vpack.c.b16 %v712, %v709
    %v812 = vpack.c.b16 %v716, %v713
    %v813 = vpack.c.b16 %v717, %v714
    %v814 = vpack.c.b16 %v718, %v715
    %v815 = vpack.c.b16 %v722, %v719
    %v816 = vpack.c.b16 %v723, %v720
    %v817 = vpack.c.b16 %v724, %v721
    %v818 = vpack.c.b16 %v728, %v725
    %v819 = vpack.c.b16 %v729, %v726
    %v820 = vpack.c.b16 %v730, %v727
    %v821 = vpack.c.b16 %v734, %v731
    %v822 = vpack.c.b16 %v735, %v732
    %v823 = vpack.c.b16 %v736, %v733
    %v824 = vpack.c.b16 %v740, %v737
    %v825 = vpack.c.b16 %v741, %v738
    %v826 = vpack.c.b16 %v742, %v739
    %v827 = vpack.c.b16 %v746, %v743
    %v828 = vpack.c.b16 %v747, %v744
    %v829 = vpack.c.b16 %v748, %v745
    %v830 = vpack.c.b16 %v752, %v749
    %v831 = vpack.c.b16 %v753, %v750
    %v832 = vpack.c.b16 %v754, %v751
    %v833 = vpack.c.b16 %v758, %v755
    %v834 = vpack.c.b16 %v759, %v756
    %v835 = vpack.c.b16 %v760, %v757
    %v836 = vpack.c.b16 %v764, %v761
    %v837 = vpack.c.b16 %v765, %v762
    %v838 = vpack.c.b16 %v766, %v763
    %911 = vmatpush.bf16.msra.mxu0 %v788
    %912 = vmatpush.bf16.msra.mxu0 %v785
    %913 = vmatpush.bf16.msra.mxu0 %v782
    %914 = vmatpush.bf16.msra.mxu0 %v779
    %915 = vmatpush.bf16.msra.mxu0 %v776
    %916 = vmatpush.bf16.msra.mxu0 %v773
    %917 = vmatpush.bf16.msra.mxu0 %v770
    %918 = vmatpush.bf16.msra.mxu0 %v767
    %919 = vmatmul.bf16.gmra.mxu0 %v428
    %v920 = vpop.f32.mrf.mxu0
    %v921 = vadd.f32 0.0, %v920
    %v922 = vpop.f32.mrf.mxu0
    %923 = vdwg.mxu0
    %924 = vmatpush.bf16.msra.mxu0 %v812
    %925 = vmatpush.bf16.msra.mxu0 %v809
    %926 = vmatpush.bf16.msra.mxu0 %v806
    %927 = vmatpush.bf16.msra.mxu0 %v803
    %928 = vmatpush.bf16.msra.mxu0 %v800
    %929 = vmatpush.bf16.msra.mxu0 %v797
    %930 = vmatpush.bf16.msra.mxu0 %v794
    %931 = vmatpush.bf16.msra.mxu0 %v791
    %932 = vmatmul.bf16.gmra.mxu0 %v429
    %v933 = vpop.f32.mrf.mxu0
    %v934 = vadd.f32 %v921, %v933
    %v935 = vpop.f32.mrf.mxu0
    %936 = vdwg.mxu0
    %937 = vmatpush.bf16.msra.mxu0 %v836
    %938 = vmatpush.bf16.msra.mxu0 %v833
    %939 = vmatpush.bf16.msra.mxu0 %v830
    %940 = vmatpush.bf16.msra.mxu0 %v827
    %941 = vmatpush.bf16.msra.mxu0 %v824
    %942 = vmatpush.bf16.msra.mxu0 %v821
    %943 = vmatpush.bf16.msra.mxu0 %v818
    %944 = vmatpush.bf16.msra.mxu0 %v815
    %945 = vmatmul.bf16.gmra.mxu0 %v430
    %v946 = vpop.f32.mrf.mxu0
    %v947 = vadd.f32 %v934, %v946
    %v948 = vpop.f32.mrf.mxu0
    %949 = vdwg.mxu0
    %950 = vmatpush.bf16.msra.mxu0 %v789
    %951 = vmatpush.bf16.msra.mxu0 %v786
    %952 = vmatpush.bf16.msra.mxu0 %v783
    %953 = vmatpush.bf16.msra.mxu0 %v780
    %954 = vmatpush.bf16.msra.mxu0 %v777
    %955 = vmatpush.bf16.msra.mxu0 %v774
    %956 = vmatpush.bf16.msra.mxu0 %v771
    %957 = vmatpush.bf16.msra.mxu0 %v768
    %958 = vmatmul.bf16.gmra.mxu0 %v428
    %v959 = vpop.f32.mrf.mxu0
    %v960 = vadd.f32 0.0, %v959
    %v961 = vpop.f32.mrf.mxu0
    %962 = vdwg.mxu0
    %963 = vmatpush.bf16.msra.mxu0 %v813
    %964 = vmatpush.bf16.msra.mxu0 %v810
    %965 = vmatpush.bf16.msra.mxu0 %v807
    %966 = vmatpush.bf16.msra.mxu0 %v804
    %967 = vmatpush.bf16.msra.mxu0 %v801
    %968 = vmatpush.bf16.msra.mxu0 %v798
    %969 = vmatpush.bf16.msra.mxu0 %v795
    %970 = vmatpush.bf16.msra.mxu0 %v792
    %971 = vmatmul.bf16.gmra.mxu0 %v429
    %v972 = vpop.f32.mrf.mxu0
    %v973 = vadd.f32 %v960, %v972
    %v974 = vpop.f32.mrf.mxu0
    %975 = vdwg.mxu0
    %976 = vmatpush.bf16.msra.mxu0 %v837
    %977 = vmatpush.bf16.msra.mxu0 %v834
    %978 = vmatpush.bf16.msra.mxu0 %v831
    %979 = vmatpush.bf16.msra.mxu0 %v828
    %980 = vmatpush.bf16.msra.mxu0 %v825
    %981 = vmatpush.bf16.msra.mxu0 %v822
    %982 = vmatpush.bf16.msra.mxu0 %v819
    %983 = vmatpush.bf16.msra.mxu0 %v816
    %984 = vmatmul.bf16.gmra.mxu0 %v430
    %v985 = vpop.f32.mrf.mxu0
    %v986 = vadd.f32 %v973, %v985
    %v987 = vpop.f32.mrf.mxu0
    %988 = vdwg.mxu0
    %989 = vmatpush.bf16.msra.mxu0 %v790
    %990 = vmatpush.bf16.msra.mxu0 %v787
    %991 = vmatpush.bf16.msra.mxu0 %v784
    %992 = vmatpush.bf16.msra.mxu0 %v781
    %993 = vmatpush.bf16.msra.mxu0 %v778
    %994 = vmatpush.bf16.msra.mxu0 %v775
    %995 = vmatpush.bf16.msra.mxu0 %v772
    %996 = vmatpush.bf16.msra.mxu0 %v769
    %997 = vmatmul.bf16.gmra.mxu0 %v428
    %v998 = vpop.f32.mrf.mxu0
    %v999 = vadd.f32 0.0, %v998
    %v1000 = vpop.f32.mrf.mxu0
    %1001 = vdwg.mxu0
    %1002 = vmatpush.bf16.msra.mxu0 %v814
    %1003 = vmatpush.bf16.msra.mxu0 %v811
    %1004 = vmatpush.bf16.msra.mxu0 %v808
    %1005 = vmatpush.bf16.msra.mxu0 %v805
    %1006 = vmatpush.bf16.msra.mxu0 %v802
    %1007 = vmatpush.bf16.msra.mxu0 %v799
    %1008 = vmatpush.bf16.msra.mxu0 %v796
    %1009 = vmatpush.bf16.msra.mxu0 %v793
    %1010 = vmatmul.bf16.gmra.mxu0 %v429
    %v1011 = vpop.f32.mrf.mxu0
    %v1012 = vadd.f32 %v999, %v1011
    %v1013 = vpop.f32.mrf.mxu0
    %1014 = vdwg.mxu0
    %1015 = vmatpush.bf16.msra.mxu0 %v838
    %1016 = vmatpush.bf16.msra.mxu0 %v835
    %1017 = vmatpush.bf16.msra.mxu0 %v832
    %1018 = vmatpush.bf16.msra.mxu0 %v829
    %1019 = vmatpush.bf16.msra.mxu0 %v826
    %1020 = vmatpush.bf16.msra.mxu0 %v823
    %1021 = vmatpush.bf16.msra.mxu0 %v820
    %1022 = vmatpush.bf16.msra.mxu0 %v817
    %1023 = vmatmul.bf16.gmra.mxu0 %v430
    %v1024 = vpop.f32.mrf.mxu0
    %v1025 = vadd.f32 %v1012, %v1024
    %v1026 = vpop.f32.mrf.mxu0
    %1027 = vdwg.mxu0
    %v1028 = vpack.c.bf16 %v986, %v947
    %v1029 = vpack.c.bf16 %v1025, %v1025
    %v1030 = vunpack.c.l.bf16 %v1028
    %v1031 = vunpack.c.h.bf16 %v1028
    %v1032 = vunpack.c.l.bf16 %v1029
    %v1033 = vmax.f32 %v1030, 0.0
    %v1034 = vmax.f32 %v1031, 0.0
    %v1035 = vmax.f32 %v1032, 0.0
    %v1036 = vpack.c.bf16 %v1033, %v1033
    %v1037 = vpack.c.bf16 %v1034, %v1034
    %v1038 = vpack.c.bf16 %v1035, %v1035
    %v1039 = vld [vmem:[%s3] sm:$0xf]
    %v1040 = vld [vmem:[%s3 + $0x4] sm:$0xf]
    %v1041 = vld [vmem:[%s3 + $0x8] sm:$0xf]
    %v1042 = vld [vmem:[%s3 + $0xc] sm:$0xf]
    %v1043 = vld [vmem:[%s3 + $0x10] sm:$0xf]
    %v1044 = vld [vmem:[%s3 + $0x14] sm:$0xf]
    %v1045 = vld [vmem:[%s3 + $0x18] sm:$0xf]
    %v1046 = vld [vmem:[%s3 + $0x1c] sm:$0xf]
    %v1047 = vld [vmem:[%s3 + $0x20] sm:$0xf]
    %v1048 = vld [vmem:[%s3 + $0x24] sm:$0xf]
    %v1049 = vld [vmem:[%s3 + $0x28] sm:$0xf]
    %v1050 = vld [vmem:[%s3 + $0x2c] sm:$0xf]
    %v1051 = vld [vmem:[%s3 + $0x30] sm:$0xf]
    %v1052 = vld [vmem:[%s3 + $0x34] sm:$0xf]
    %v1053 = vld [vmem:[%s3 + $0x38] sm:$0xf]
    %v1054 = vld [vmem:[%s3 + $0x3c] sm:$0xf]
    %v1055 = vld [vmem:[%s3 + $0x40] sm:$0xf]
    %v1056 = vld [vmem:[%s3 + $0x44] sm:$0xf]
    %v1057 = vld [vmem:[%s3 + $0x48] sm:$0xf]
    %v1058 = vld [vmem:[%s3 + $0x4c] sm:$0xf]
    %v1059 = vld [vmem:[%s3 + $0x50] sm:$0xf]
    %v1060 = vld [vmem:[%s3 + $0x54] sm:$0xf]
    %v1061 = vld [vmem:[%s3 + $0x58] sm:$0xf]
    %v1062 = vld [vmem:[%s3 + $0x5c] sm:$0xf]
    %v1063 = vld [vmem:[%s3 + $0x60] sm:$0xf]
    %v1064 = vld [vmem:[%s3 + $0x64] sm:$0xf]
    %v1065 = vld [vmem:[%s3 + $0x68] sm:$0xf]
    %v1066 = vld [vmem:[%s3 + $0x6c] sm:$0xf]
    %v1067 = vld [vmem:[%s3 + $0x70] sm:$0xf]
    %v1068 = vld [vmem:[%s3 + $0x74] sm:$0xf]
    %v1069 = vld [vmem:[%s3 + $0x78] sm:$0xf]
    %v1070 = vld [vmem:[%s3 + $0x7c] sm:$0xf]
    %v1071 = vld [vmem:[%s3 + $0x80] sm:$0xf]
    %v1072 = vld [vmem:[%s3 + $0x84] sm:$0xf]
    %v1073 = vld [vmem:[%s3 + $0x88] sm:$0xf]
    %v1074 = vld [vmem:[%s3 + $0x8c] sm:$0xf]
    %v1075 = vld [vmem:[%s3 + $0x90] sm:$0xf]
    %v1076 = vld [vmem:[%s3 + $0x94] sm:$0xf]
    %v1077 = vld [vmem:[%s3 + $0x98] sm:$0xf]
    %v1078 = vld [vmem:[%s3 + $0x9c] sm:$0xf]
    %v1079 = vld [vmem:[%s3 + $0xa0] sm:$0xf]
    %v1080 = vld [vmem:[%s3 + $0xa4] sm:$0xf]
    %v1081 = vld [vmem:[%s3 + $0xa8] sm:$0xf]
    %v1082 = vld [vmem:[%s3 + $0xac] sm:$0xf]
    %v1083 = vld [vmem:[%s3 + $0xb0] sm:$0xf]
    %v1084 = vld [vmem:[%s3 + $0xb4] sm:$0xf]
    %v1085 = vld [vmem:[%s3 + $0xb8] sm:$0xf]
    %v1086 = vld [vmem:[%s3 + $0xbc] sm:$0xf]
    %v1135 = vunpack.c.l.b16 %v1039
    %v1136 = vunpack.c.l.b16 %v1040
    %v1137 = vunpack.c.l.b16 %v1041
    %v1138 = vunpack.c.l.b16 %v1042
    %v1139 = vunpack.c.l.b16 %v1043
    %v1140 = vunpack.c.l.b16 %v1044
    %v1141 = vunpack.c.l.b16 %v1045
    %v1142 = vunpack.c.l.b16 %v1046
    %v1143 = vunpack.c.l.b16 %v1047
    %v1144 = vunpack.c.l.b16 %v1048
    %v1145 = vunpack.c.l.b16 %v1049
    %v1146 = vunpack.c.l.b16 %v1050
    %v1147 = vunpack.c.l.b16 %v1051
    %v1148 = vunpack.c.l.b16 %v1052
    %v1149 = vunpack.c.l.b16 %v1053
    %v1150 = vunpack.c.l.b16 %v1054
    %v1151 = vunpack.c.l.b16 %v1055
    %v1152 = vunpack.c.l.b16 %v1056
    %v1153 = vunpack.c.l.b16 %v1057
    %v1154 = vunpack.c.l.b16 %v1058
    %v1155 = vunpack.c.l.b16 %v1059
    %v1156 = vunpack.c.l.b16 %v1060
    %v1157 = vunpack.c.l.b16 %v1061
    %v1158 = vunpack.c.l.b16 %v1062
    %v1159 = vunpack.c.l.b16 %v1063
    %v1160 = vunpack.c.l.b16 %v1064
    %v1161 = vunpack.c.l.b16 %v1065
    %v1162 = vunpack.c.l.b16 %v1066
    %v1163 = vunpack.c.l.b16 %v1067
    %v1164 = vunpack.c.l.b16 %v1068
    %v1165 = vunpack.c.l.b16 %v1069
    %v1166 = vunpack.c.l.b16 %v1070
    %v1167 = vunpack.c.l.b16 %v1071
    %v1168 = vunpack.c.l.b16 %v1072
    %v1169 = vunpack.c.l.b16 %v1073
    %v1170 = vunpack.c.l.b16 %v1074
    %v1171 = vunpack.c.l.b16 %v1075
    %v1172 = vunpack.c.l.b16 %v1076
    %v1173 = vunpack.c.l.b16 %v1077
    %v1174 = vunpack.c.l.b16 %v1078
    %v1175 = vunpack.c.l.b16 %v1079
    %v1176 = vunpack.c.l.b16 %v1080
    %v1177 = vunpack.c.l.b16 %v1081
    %v1178 = vunpack.c.l.b16 %v1082
    %v1179 = vunpack.c.l.b16 %v1083
    %v1180 = vunpack.c.l.b16 %v1084
    %v1181 = vunpack.c.l.b16 %v1085
    %v1182 = vunpack.c.l.b16 %v1086
    %v1183 = vpack.c.b16 %v1136, %v1135
    %v1184 = vpack.c.b16 %v1138, %v1137
    %v1185 = vpack.c.b16 %v1140, %v1139
    %v1186 = vpack.c.b16 %v1142, %v1141
    %v1187 = vpack.c.b16 %v1144, %v1143
    %v1188 = vpack.c.b16 %v1146, %v1145
    %v1189 = vpack.c.b16 %v1148, %v1147
    %v1190 = vpack.c.b16 %v1150, %v1149
    %v1191 = vpack.c.b16 %v1152, %v1151
    %v1192 = vpack.c.b16 %v1154, %v1153
    %v1193 = vpack.c.b16 %v1156, %v1155
    %v1194 = vpack.c.b16 %v1158, %v1157
    %v1195 = vpack.c.b16 %v1160, %v1159
    %v1196 = vpack.c.b16 %v1162, %v1161
    %v1197 = vpack.c.b16 %v1164, %v1163
    %v1198 = vpack.c.b16 %v1166, %v1165
    %v1199 = vpack.c.b16 %v1168, %v1167
    %v1200 = vpack.c.b16 %v1170, %v1169
    %v1201 = vpack.c.b16 %v1172, %v1171
    %v1202 = vpack.c.b16 %v1174, %v1173
    %v1203 = vpack.c.b16 %v1176, %v1175
    %v1204 = vpack.c.b16 %v1178, %v1177
    %v1205 = vpack.c.b16 %v1180, %v1179
    %v1206 = vpack.c.b16 %v1182, %v1181
    %1231 = vmatpush.bf16.msra.mxu0 %v1190
    %1232 = vmatpush.bf16.msra.mxu0 %v1189
    %1233 = vmatpush.bf16.msra.mxu0 %v1188
    %1234 = vmatpush.bf16.msra.mxu0 %v1187
    %1235 = vmatpush.bf16.msra.mxu0 %v1186
    %1236 = vmatpush.bf16.msra.mxu0 %v1185
    %1237 = vmatpush.bf16.msra.mxu0 %v1184
    %1238 = vmatpush.bf16.msra.mxu0 %v1183
    %1239 = vmatmul.bf16.gmra.mxu0 %v1036
    %v1240 = vpop.f32.mrf.mxu0
    %v1241 = vadd.f32 0.0, %v1240
    %v1242 = vpop.f32.mrf.mxu0
    %1243 = vdwg.mxu0
    %1244 = vmatpush.bf16.msra.mxu0 %v1198
    %1245 = vmatpush.bf16.msra.mxu0 %v1197
    %1246 = vmatpush.bf16.msra.mxu0 %v1196
    %1247 = vmatpush.bf16.msra.mxu0 %v1195
    %1248 = vmatpush.bf16.msra.mxu0 %v1194
    %1249 = vmatpush.bf16.msra.mxu0 %v1193
    %1250 = vmatpush.bf16.msra.mxu0 %v1192
    %1251 = vmatpush.bf16.msra.mxu0 %v1191
    %1252 = vmatmul.bf16.gmra.mxu0 %v1037
    %v1253 = vpop.f32.mrf.mxu0
    %v1254 = vadd.f32 %v1241, %v1253
    %v1255 = vpop.f32.mrf.mxu0
    %1256 = vdwg.mxu0
    %1257 = vmatpush.bf16.msra.mxu0 %v1206
    %1258 = vmatpush.bf16.msra.mxu0 %v1205
    %1259 = vmatpush.bf16.msra.mxu0 %v1204
    %1260 = vmatpush.bf16.msra.mxu0 %v1203
    %1261 = vmatpush.bf16.msra.mxu0 %v1202
    %1262 = vmatpush.bf16.msra.mxu0 %v1201
    %1263 = vmatpush.bf16.msra.mxu0 %v1200
    %1264 = vmatpush.bf16.msra.mxu0 %v1199
    %1265 = vmatmul.bf16.gmra.mxu0 %v1038
    %v1266 = vpop.f32.mrf.mxu0
    %v1267 = vadd.f32 %v1254, %v1266
    %v1268 = vpop.f32.mrf.mxu0
    %1269 = vdwg.mxu0
    %1270 = vst [vmem:[#allocation2] sm:$0xff] %v1267
    // Predicated region
    $region18: #{class_relu_forward.1} parent=1 // pred_check
      _
    $region19: #{class_relu_forward.1} parent=1 // pred_check_branch
      %1272 = sbr.rel (0) target = $region21
    $region20: #{class_relu_forward.1} parent=1 // pred_region
      %1274 = vsyncadd [#allocation3], 0
      %s1276 = sshll.u32 [#allocation2], 4
      %s1277 = int_to_ptr.vmem [resolvable:$true] %s1276
      %s1278 = sshll.u32 %s4, 4
      %s1279 = int_to_ptr.hbm [resolvable:$true] %s1278
      %1281 = dma.vmem_to_hbm [thread:$0]  %s1277, 128, %s1279, [#allocation3]
    $region21: #{class_relu_forward.1} parent=1 // pred_fallthru
      _
    // Predicated region
    $region22: #{class_relu_forward.1} parent=1 // pred_check
      _
    $region23: #{class_relu_forward.1} parent=1 // pred_check_branch
      %1283 = sbr.rel (0) target = $region25
    $region24: #{class_relu_forward.1} parent=1 // pred_region
      %1285 = dma.done [#allocation3], 128
    $region25: #{class_relu_forward.1} parent=1 // pred_fallthru
      _
    %1286 = vsyncpa [#allocation3], 1

</llo_original>
